<compile_context>
chip_gen: v7x
topology: tpu7x:2x2x1
jax: 0.10.0
libtpu: 0.0.40
codegen_flags: <defaults>
</compile_context>

<pallas_src>
import functools

import jax
import jax.numpy as jnp
from jax.experimental import pallas as pl
from jax.experimental.pallas import tpu as pltpu

_N = 4
_ELEMS = _N * _N          # 16 elements per matrix -> sublane axis of the slab
_LANE = 128               # lane width; batch tiles are multiples of this
_DEFAULT_TILE_B = 2048    # 16 * 2048 * 4 B = 128 KiB per input tile


def _round_up(x, m):
    return (x + m - 1) // m * m


# ----------------------------------------------------------------------------
# Kernel: one (16, TILE_B) tile -> (1, TILE_B) per-matrix MSE losses.
# ----------------------------------------------------------------------------
def _mse_sigmoid_kernel(adj_ref, w_ref, out_ref, *, k, inv_n):
    # adj_ref, w_ref: VMEM (16, TILE_B) f32;  out_ref: VMEM (1, TILE_B) f32
    mid = jax.nn.sigmoid(k * w_ref[...])            # exp on EUP, exact divide
    diff = mid - adj_ref[...]
    # Sublane reduction over the 16 per-matrix elements -> lane-dense row.
    out_ref[...] = jnp.sum(diff * diff, axis=0, keepdims=True) * inv_n


# ----------------------------------------------------------------------------
# Production entry point: lane-oriented (16, B) slabs (batch on the lane axis).
# ----------------------------------------------------------------------------
def ran_matrix_loss_slab(adj_slab, w_slab, k, *, tile_b=_DEFAULT_TILE_B):
    """adj_slab, w_slab: (16, B) f32 slabs. Returns (B,) per-matrix MSE losses."""
    adj_slab = adj_slab.astype(jnp.float32)
    w_slab = w_slab.astype(jnp.float32)
    b = adj_slab.shape[1]

    # Tile size: multiple of 128 lanes, no larger than the (padded) batch.
    tile = min(_round_up(tile_b, _LANE), _round_up(b, _LANE))
    b_pad = _round_up(b, tile)
    if b_pad != b:
        pad = ((0, 0), (0, b_pad - b))
        adj_slab = jnp.pad(adj_slab, pad)   # padded columns are sliced off below
        w_slab = jnp.pad(w_slab, pad)

    kernel = functools.partial(
        _mse_sigmoid_kernel, k=float(k), inv_n=float(1.0 / _ELEMS)
    )
    out = pl.pallas_call(
        kernel,
        out_shape=jax.ShapeDtypeStruct((1, b_pad), jnp.float32),
        grid=(b_pad // tile,),
        in_specs=[
            pl.BlockSpec((_ELEMS, tile), lambda i: (0, i)),   # adj tile
            pl.BlockSpec((_ELEMS, tile), lambda i: (0, i)),   # W tile
        ],
        out_specs=pl.BlockSpec((1, tile), lambda i: (0, i)),  # lane-dense output
        compiler_params=pltpu.CompilerParams(
            dimension_semantics=("parallel",),     # 2 TCs on v7x; no-op elsewhere
            vmem_limit_bytes=32 * 1024 * 1024,     # explicit: fits v7x's 64 MiB VMEM
        ),
    )(adj_slab, w_slab)
    return out[0, :b]


# ----------------------------------------------------------------------------
# Convenience wrappers (module-shaped inputs).
# ----------------------------------------------------------------------------
def ran_matrix_forward_batched(adjs, ws, k, *, tile_b=_DEFAULT_TILE_B):
    """adjs, ws: (B, 4, 4). Returns (B,) per-matrix MSE losses.

    Prefer ran_matrix_loss_slab with upstream-stored (16, B) slabs at large B
    to avoid this host-side transpose (extra HBM read+write of both inputs).
    """
    b = adjs.shape[0]
    adj_slab = adjs.astype(jnp.float32).reshape(b, _ELEMS).T   # (16, B)
    w_slab = ws.astype(jnp.float32).reshape(b, _ELEMS).T       # (16, B)
    return ran_matrix_loss_slab(adj_slab, w_slab, k, tile_b=tile_b)


def ran_matrix_forward(adj, w, k):
    """Exact RanMatrix.forward: scalar mean(square(sigmoid(k * w) - adj))."""
    return ran_matrix_forward_batched(adj[None], w[None], k)[0]


# ----------------------------------------------------------------------------
# Pure-JAX reference.
# ----------------------------------------------------------------------------
def ran_matrix_forward_ref(adj, w, k):
    mid = jax.nn.sigmoid(k * w.astype(jnp.float32))
    return jnp.mean(jnp.square(mid - adj.astype(jnp.float32)))


if __name__ == "__main__":
    k = 1  # as in the module preamble

    key = jax.random.PRNGKey(0)
    key_w, key_adj, key_wb, key_ab = jax.random.split(key, 4)

    # Deterministic stand-in for torch.rand(4, 4) parameter (uniform [0, 1)).
    w = jax.random.uniform(key_w, (_N, _N), dtype=jnp.float32)
    # adj = adj + eye(N), as in the module's preamble.
    adj = jax.random.uniform(key_adj, (_N, _N), dtype=jnp.float32) + jnp.eye(
        _N, dtype=jnp.float32
    )

    # --- single-matrix forward (module semantics), routed through the kernel ---
    out = jax.block_until_ready(ran_matrix_forward(adj, w, k))
    ref = ran_matrix_forward_ref(adj, w, k)
    assert jnp.allclose(out, ref, rtol=1e-5, atol=1e-6), (out, ref)

    # --- batched path: B independent problems, multi-tile grid + padding ---
    B = 300  # not a multiple of 128 -> exercises padding; tile_b=128 -> grid=(3,)
    ws = jax.random.uniform(key_wb, (B, _N, _N), dtype=jnp.float32)
    adjs = jax.random.uniform(key_ab, (B, _N, _N), dtype=jnp.float32) + jnp.eye(
        _N, dtype=jnp.float32
    )
    out_b = jax.block_until_ready(
        ran_matrix_forward_batched(adjs, ws, k, tile_b=128)
    )
    ref_b = jax.vmap(lambda a, ww: ran_matrix_forward_ref(a, ww, k))(adjs, ws)
    assert out_b.shape == (B,), out_b.shape
    assert jnp.allclose(out_b, ref_b, rtol=1e-5, atol=1e-6), (out_b, ref_b)

    print("KERNEL_OK")
</pallas_src>

<mosaic_0001>
module attributes {stable_mosaic.version = 11 : i64} {
  func.func @_mse_sigmoid_kernel(%arg0: i32, %arg1: memref<16x128xf32, #tpu.memory_space<vmem>>, %arg2: memref<16x128xf32, #tpu.memory_space<vmem>>, %arg3: memref<1x128xf32, #tpu.memory_space<vmem>>) attributes {dimension_semantics = [#tpu.dimension_semantics<parallel>], iteration_bounds = array<i64: 1>, scalar_prefetch = 0 : i64, scratch_operands = 0 : i64, tpu.core_type = #tpu.core_type<tc>, window_params = [{transform_indices = @transform_0, window_bounds = array<i64: 16, 128>}, {transform_indices = @transform_1, window_bounds = array<i64: 16, 128>}, {transform_indices = @transform_2, window_bounds = array<i64: 1, 128>}]} {
    %c0 = arith.constant 0 : index
    %c0_0 = arith.constant 0 : index
    %0 = vector.load %arg2[%c0, %c0_0] : memref<16x128xf32, #tpu.memory_space<vmem>>, vector<16x128xf32>
    %cst = arith.constant 1.000000e+00 : f32
    %1 = vector.broadcast %cst : f32 to vector<16x128xf32>
    %2 = arith.mulf %1, %0 : vector<16x128xf32>
    %3 = arith.negf %2 : vector<16x128xf32>
    %4 = math.exp %3 : vector<16x128xf32>
    %cst_1 = arith.constant 1.000000e+00 : f32
    %5 = vector.broadcast %cst_1 : f32 to vector<16x128xf32>
    %6 = arith.addf %5, %4 : vector<16x128xf32>
    %7 = arith.divf %5, %6 : vector<16x128xf32>
    %c0_2 = arith.constant 0 : index
    %c0_3 = arith.constant 0 : index
    %8 = vector.load %arg1[%c0_2, %c0_3] : memref<16x128xf32, #tpu.memory_space<vmem>>, vector<16x128xf32>
    %9 = arith.subf %7, %8 : vector<16x128xf32>
    %10 = arith.mulf %9, %9 : vector<16x128xf32>
    %cst_4 = arith.constant dense<0.000000e+00> : vector<128xf32>
    %11 = vector.multi_reduction <add>, %10, %cst_4 [0] : vector<16x128xf32> to vector<128xf32>
    %12 = vector.shape_cast %11 : vector<128xf32> to vector<1x128xf32>
    %cst_5 = arith.constant 6.250000e-02 : f32
    %13 = vector.broadcast %cst_5 : f32 to vector<1x128xf32>
    %14 = arith.mulf %12, %13 : vector<1x128xf32>
    %c0_6 = arith.constant 0 : index
    %c0_7 = arith.constant 0 : index
    %15 = vector.load %arg3[%c0_6, %c0_7] : memref<1x128xf32, #tpu.memory_space<vmem>>, vector<1x128xf32>
    tpu.vector_store %arg3[%c0_6, %c0_7], %14 {strides = array<i32>} : memref<1x128xf32, #tpu.memory_space<vmem>>, vector<1x128xf32>,
    return
  }
  func.func @transform_0(%arg0: i32) -> (i32, i32) {
    %c0_i32 = arith.constant 0 : i32
    %c0_i32_0 = arith.constant 0 : i32
    return %c0_i32, %arg0 : i32, i32
  }
  func.func @transform_1(%arg0: i32) -> (i32, i32) {
    %c0_i32 = arith.constant 0 : i32
    %c0_i32_0 = arith.constant 0 : i32
    return %c0_i32, %arg0 : i32, i32
  }
  func.func @transform_2(%arg0: i32) -> (i32, i32) {
    %c0_i32 = arith.constant 0 : i32
    %c0_i32_0 = arith.constant 0 : i32
    return %c0_i32, %arg0 : i32, i32
  }
}

</mosaic_0001>

<llo_original>
// kernel: tpu_custom_call.1
$region0: #{tpu_custom_call.1}
  #allocation0 [shape = 'u32[]', space=smem, size = 0x4, offset = 0x4, fixed_abs, tag = 'smem constant byte address 0x4 - core index']
  #allocation1 [shape = 'u32[144,128]{1,0:T(1,128)}', space=vmem, size = 0x12000, scoped, tag = 'internal scratch']
  %s0 = inlined_call_operand.hbm [shape: f32[16,128], index: 0, kind: input, shape index: {}]
  %s1 = inlined_call_operand.hbm [shape: f32[16,128], index: 1, kind: input, shape index: {}]
  %s2 = inlined_call_operand.hbm [shape: f32[1,128], index: 2, kind: output, shape index: {}]
  %s3 = sld [smem:[#allocation0]]
  $region26: #{tpu_custom_call.1} parent=0
    _
  %s5 = ssub.s32 1, %s3
  %s6 = scalar_select 0, %s5, %s3
  $region1: #{tpu_custom_call.1} parent=0
    #allocation2 [shape = 'u8[8192]{0}', space=vmem, size = 0x2000, scoped, tag = 'input window, operand 0, single buffered']
    #allocation3 [shape = 's32[1]{0}', space=sflag, size = 0x4, scoped, tag = 'scoped memory for tpu_custom_call.1']
    #allocation4 [shape = 's32[1]{0}', space=sflag, size = 0x4, scoped, tag = 'scoped memory for tpu_custom_call.1']
    #allocation5 [shape = 'u8[8192]{0}', space=vmem, size = 0x2000, scoped, tag = 'input window, operand 1, single buffered']
    #allocation6 [shape = 's32[1]{0}', space=sflag, size = 0x4, scoped, tag = 'scoped memory for tpu_custom_call.1']
    #allocation7 [shape = 'u8[512]{0}', space=vmem, size = 0x400, scoped, tag = 'output window, operand 0, single buffered']
    %7 = vsyncpa [#allocation3], 0
    %8 = vsyncpa [#allocation6], 0
    %9 = vsyncpa [#allocation4], 0
    // Predicated region
    $region2: #{tpu_custom_call.1} parent=1 // pred_check
      _
    $region3: #{tpu_custom_call.1} parent=1 // pred_check_branch
      %11 = sbr.rel (0) target = $region5
    $region4: #{tpu_custom_call.1} parent=1 // pred_region
      %s13 = ssub.s32 256, 256
      %14 = vsyncadd [#allocation3], %s13
      %s15 = sshll.u32 [#allocation2], 4
      %s16 = int_to_ptr.vmem [resolvable:$true] %s15
      %21 = dma.hbm_to_vmem [thread:$0]  %s0, 256, %s16, [#allocation3], 128, 128, 8
    $region5: #{tpu_custom_call.1} parent=1 // pred_fallthru
      _
    // Predicated region
    $region6: #{tpu_custom_call.1} parent=1 // pred_check
      _
    $region7: #{tpu_custom_call.1} parent=1 // pred_check_branch
      %23 = sbr.rel (0) target = $region9
    $region8: #{tpu_custom_call.1} parent=1 // pred_region
      %s25 = ssub.s32 256, 256
      %26 = vsyncadd [#allocation6], %s25
      %s27 = sshll.u32 [#allocation5], 4
      %s28 = int_to_ptr.vmem [resolvable:$true] %s27
      %33 = dma.hbm_to_vmem [thread:$0]  %s1, 256, %s28, [#allocation6], 128, 128, 8
    $region9: #{tpu_custom_call.1} parent=1 // pred_fallthru
      _
    // Predicated region
    $region10: #{tpu_custom_call.1} parent=1 // pred_check
      _
    $region11: #{tpu_custom_call.1} parent=1 // pred_check_branch
      %35 = sbr.rel (0) target = $region13
    $region12: #{tpu_custom_call.1} parent=1 // pred_region
      %36 = dma.done [#allocation3], 256
    $region13: #{tpu_custom_call.1} parent=1 // pred_fallthru
      _
    // Predicated region
    $region14: #{tpu_custom_call.1} parent=1 // pred_check
      _
    $region15: #{tpu_custom_call.1} parent=1 // pred_check_branch
      %38 = sbr.rel (0) target = $region17
    $region16: #{tpu_custom_call.1} parent=1 // pred_region
      %39 = dma.done [#allocation6], 256
    $region17: #{tpu_custom_call.1} parent=1 // pred_fallthru
      _
    %v40 = vld [vmem:[#allocation5] sm:$0xff]
    %v41 = vld [vmem:[#allocation5 + $0x8] sm:$0xff]
    %v42 = vxor.u32 %v40, 2147483648
    %v43 = vxor.u32 %v41, 2147483648
    %v44 = vmul.f32 %v42, 1.442695
    %v45 = vpow.pop %v44
    %v46 = vmul.f32 %v43, 1.442695
    %v47 = vpow.pop %v46
    %v48 = vadd.f32 %v45, 1.0
    %v49 = vadd.f32 %v47, 1.0
    %v50 = vrcp.pop %v48
    %v51 = vmul.f32 1.0, %v50
    %v52 = vrcp.pop %v49
    %v53 = vmul.f32 1.0, %v52
    %v54 = vld [vmem:[#allocation2] sm:$0xff]
    %v55 = vld [vmem:[#allocation2 + $0x8] sm:$0xff]
    %v56 = vsub.f32 %v51, %v54
    %v57 = vsub.f32 %v53, %v55
    %v58 = vmul.f32 %v56, %v56
    %v59 = vmul.f32 %v57, %v57
    %v60 = vadd.f32 %v58, %v59
    %v61 = vrot.slane %v60, 4
    %v62 = vadd.f32 %v60, %v61
    %v63 = vrot.slane %v62, 2
    %v64 = vadd.f32 %v62, %v63
    %v65 = vrot.slane %v64, 1
    %v66 = vadd.f32 %v64, %v65
    %v67 = vmul.f32 %v66, 0.0625
    %68 = vst [vmem:[#allocation7] sm:$0x1] %v67
    // Predicated region
    $region18: #{tpu_custom_call.1} parent=1 // pred_check
      _
    $region19: #{tpu_custom_call.1} parent=1 // pred_check_branch
      %70 = sbr.rel (0) target = $region21
    $region20: #{tpu_custom_call.1} parent=1 // pred_region
      %s72 = ssub.s32 16, 16
      %73 = vsyncadd [#allocation4], %s72
      %s75 = sshll.u32 [#allocation7], 4
      %s76 = int_to_ptr.vmem [resolvable:$true] %s75
      %78 = dma.vmem_to_hbm [thread:$0]  %s76, 16, %s2, [#allocation4]
    $region21: #{tpu_custom_call.1} parent=1 // pred_fallthru
      _
    // Predicated region
    $region22: #{tpu_custom_call.1} parent=1 // pred_check
      _
    $region23: #{tpu_custom_call.1} parent=1 // pred_check_branch
      %80 = sbr.rel (0) target = $region25
    $region24: #{tpu_custom_call.1} parent=1 // pred_region
      %81 = dma.done [#allocation4], 16
    $region25: #{tpu_custom_call.1} parent=1 // pred_fallthru
      _
    %82 = vsyncpa [#allocation3], 1
    %83 = vsyncpa [#allocation6], 1
    %84 = vsyncpa [#allocation4], 1

</llo_original>
